<compile_context>
chip_gen: v7x
topology: tpu7x:2x2x1
jax: 0.10.0
libtpu: 0.0.40
codegen_flags: <defaults>
</compile_context>

<pallas_src>
import jax
import jax.numpy as jnp
from jax.experimental import pallas as pl
from jax.experimental.pallas import tpu as pltpu

PARTITION = 9


# ----------------------------- Pallas kernels -----------------------------

def _conv_matmul_kernel(p_ref, w_ref, b_ref, o_ref):
    # p: (1, K_pad, P3)  w: (out_dim, K_pad)  b: (out_dim, 1)  o: (1, out_dim, P3)
    # Lane axis of both the RHS load and the output store is P3 (lane-dense).
    o_ref[0] = (
        jnp.dot(w_ref[...], p_ref[0], preferred_element_type=jnp.float32)
        + b_ref[...]
    )


def conv3d_circular(patches_t, w_flat, bias):
    """Per-batch (out_dim, K_pad) @ (K_pad, P3) + bias -> (B, out_dim, P3)."""
    B, K_pad, P3 = patches_t.shape
    out_dim = w_flat.shape[0]
    return pl.pallas_call(
        _conv_matmul_kernel,
        out_shape=jax.ShapeDtypeStruct((B, out_dim, P3), jnp.float32),
        grid=(B,),
        in_specs=[
            pl.BlockSpec((1, K_pad, P3), lambda b: (b, 0, 0)),
            pl.BlockSpec((out_dim, K_pad), lambda b: (0, 0)),
            pl.BlockSpec((out_dim, 1), lambda b: (0, 0)),
        ],
        out_specs=pl.BlockSpec((1, out_dim, P3), lambda b: (b, 0, 0)),
        compiler_params=pltpu.CompilerParams(
            dimension_semantics=("parallel",),
            vmem_limit_bytes=32 * 1024 * 1024,  # comfortably fits v7x's 64 MiB VMEM
        ),
    )(patches_t, w_flat, bias)


def _combine_kernel(xa_ref, g_ref, w_ref, b_ref, o_ref):
    # Fused Gamma(x) + Lambda(mean(x)) + gathered-conv for one row tile:
    # xa: (tm, 2*in_dim)  g: (tm, out_dim)  w: (2*in_dim, out_dim)  b: (1, out_dim)
    o_ref[...] = (
        g_ref[...]
        + jnp.dot(xa_ref[...], w_ref[...], preferred_element_type=jnp.float32)
        + b_ref[...]
    )


def combine(x_aug, gathered, w_aug, bias, *, max_tile=512):
    """One streaming GEMM over all B*N rows instead of one tiny matmul per batch."""
    M, K = x_aug.shape
    out_dim = w_aug.shape[1]

    tm = min(max_tile, M)
    if tm == M and M >= 16 and M % 16 == 0:
        tm = M // 2            # keep >= 2 parallel grid steps (v7x has 2 TensorCores)
    if tm != M and tm % 8 != 0:
        tm = max(8, (tm // 8) * 8)   # sublane (8) alignment for the block shape

    Mp = pl.cdiv(M, tm) * tm
    if Mp != M:
        x_aug = jnp.pad(x_aug, ((0, Mp - M), (0, 0)))
        gathered = jnp.pad(gathered, ((0, Mp - M), (0, 0)))

    out = pl.pallas_call(
        _combine_kernel,
        out_shape=jax.ShapeDtypeStruct((Mp, out_dim), jnp.float32),
        grid=(Mp // tm,),
        in_specs=[
            pl.BlockSpec((tm, K), lambda i: (i, 0)),
            pl.BlockSpec((tm, out_dim), lambda i: (i, 0)),
            pl.BlockSpec((K, out_dim), lambda i: (0, 0)),
            pl.BlockSpec((1, out_dim), lambda i: (0, 0)),
        ],
        out_specs=pl.BlockSpec((tm, out_dim), lambda i: (i, 0)),
        compiler_params=pltpu.CompilerParams(dimension_semantics=("parallel",)),
    )(x_aug, gathered, w_aug, bias)
    return out[:M] if Mp != M else out


# ----------------------------- forward wrapper -----------------------------

def vox_mean_forward(params, x, voxel_indices, num_points, *, in_dim, out_dim):
    B = x.shape[0]
    P = PARTITION
    P3 = P ** 3

    x_flat = x.reshape(B, -1, in_dim).reshape(-1, in_dim)        # (B*N, in_dim)
    M = x_flat.shape[0]
    N = M // B

    # TODO(synk): index_add scatter and the voxel row gather are data-dependent memory
    # ops; they stay in XLA (.at[].add / jnp.take) rather than Pallas.
    conv_ready = jnp.zeros((B * P3, in_dim), jnp.float32).at[voxel_indices].add(x_flat)

    # Per-voxel mean fused into the scatter epilogue by XLA (no standalone kernel).
    # NOTE: like the PyTorch module, no divide-by-zero guard — callers pass num_points>=1.
    mean_conv_ready = conv_ready / num_points.astype(jnp.float32)[:, None]

    # .view(B, in_dim, P, P, P) — pure row-major reinterpretation (NCDHW), as in PyTorch.
    grid5 = mean_conv_ready.reshape(B, in_dim, P, P, P)

    # CircularPad3d(1) — same wrap semantics as F.pad(mode='circular').
    padded = jnp.pad(grid5, ((0, 0), (0, 0), (1, 1), (1, 1), (1, 1)), mode="wrap")

    # Transposed im2col: (B, K_pad, P3) with the big P3 dim on lanes and K zero-padded
    # to a multiple of 128 so the Pallas matmul loads/stores are unmasked and full-width.
    # TODO(synk): a fully in-VMEM 27-tap direct-conv kernel would avoid materializing
    # this 27x-expanded tensor in HBM; kept as JAX glue here for lowering robustness.
    K = in_dim * 27
    K_pad = pl.cdiv(K, 128) * 128
    pats = []
    for kz in range(3):
        for ky in range(3):
            for kx in range(3):
                pats.append(
                    padded[:, :, kz:kz + P, ky:ky + P, kx:kx + P].reshape(B, in_dim, P3)
                )
    if K_pad != K:
        pats.append(jnp.zeros((B, K_pad - K, P3), jnp.float32))
    patches_t = jnp.concatenate(pats, axis=1)                    # (B, K_pad, P3)

    # Conv weights -> (out_dim, K_pad), tap-major / channel-minor to match patches_t.
    w_flat = jnp.transpose(params["conv_w"].reshape(out_dim, in_dim, 27), (0, 2, 1))
    w_flat = w_flat.reshape(out_dim, K)
    w_flat = jnp.pad(w_flat, ((0, 0), (0, K_pad - K)))
    conv_bias = params["conv_b"].reshape(out_dim, 1)

    # Pallas conv matmul writes (B, out_dim, P3) directly (NCDHW-flat, no transpose).
    conv_out = conv3d_circular(patches_t, w_flat, conv_bias)     # (B, out_dim, P3)

    # out.view(B,P,P,P,out_dim).view(B*P^3,out_dim) — raw reinterpretation + row gather.
    gather_src = conv_out.reshape(B * P3, out_dim)
    gathered = jnp.take(gather_src, voxel_indices, axis=0)       # (B*N, out_dim)

    # Gamma(x) + Lambda(mean_batch(x)) + gathered, fused as one row-tiled GEMM:
    #   [x | broadcast(mean_b(x))] @ [gamma_w^T ; lambda_w^T] + gamma_b + gathered
    mean_b = jnp.mean(x_flat.reshape(B, N, in_dim), axis=1)      # (B, in_dim)
    mean_rows = jnp.broadcast_to(mean_b[:, None, :], (B, N, in_dim)).reshape(M, in_dim)
    x_aug = jnp.concatenate([x_flat, mean_rows], axis=1)         # (M, 2*in_dim)
    w_aug = jnp.concatenate([params["gamma_w"].T, params["lambda_w"].T], axis=0)
    layer = combine(x_aug, gathered, w_aug, params["gamma_b"].reshape(1, out_dim))

    # layer_out.view(B, out_dim, -1) — reinterpretation, not a transpose.
    return layer.reshape(B, out_dim, -1)


# ----------------------------- pure-JAX reference -----------------------------

def vox_mean_reference(params, x, voxel_indices, num_points, *, in_dim, out_dim):
    B = x.shape[0]
    P = PARTITION
    P3 = P ** 3
    hi = jax.lax.Precision.HIGHEST

    x_flat = x.reshape(B, -1, in_dim).reshape(-1, in_dim)
    N = x_flat.shape[0] // B
    conv_ready = jnp.zeros((B * P3, in_dim), jnp.float32).at[voxel_indices].add(x_flat)
    mean_conv_ready = conv_ready / num_points.astype(jnp.float32)[:, None]
    grid5 = mean_conv_ready.reshape(B, in_dim, P, P, P)
    padded = jnp.pad(grid5, ((0, 0), (0, 0), (1, 1), (1, 1), (1, 1)), mode="wrap")
    conv = jax.lax.conv_general_dilated(
        padded, params["conv_w"], window_strides=(1, 1, 1), padding="VALID",
        dimension_numbers=("NCDHW", "OIDHW", "NCDHW"), precision=hi)
    conv = conv + params["conv_b"].reshape(1, out_dim, 1, 1, 1)
    gather_src = conv.reshape(B * P3, out_dim)
    gathered = gather_src[voxel_indices]
    xb = x_flat.reshape(B, N, in_dim)
    everything = jnp.matmul(jnp.mean(xb, axis=1, keepdims=True),
                            params["lambda_w"].T, precision=hi)
    nothing = jnp.matmul(xb, params["gamma_w"].T, precision=hi) + params["gamma_b"]
    layer = gathered + (everything + nothing).reshape(-1, out_dim)
    return layer.reshape(B, out_dim, -1)


# --------------------------------- main ---------------------------------

if __name__ == "__main__":
    B, N, in_dim, out_dim = 2, 16, 4, 8
    P3 = PARTITION ** 3

    key = jax.random.PRNGKey(0)
    k_x, k_idx, k_cw, k_cb, k_gw, k_gb, k_lw = jax.random.split(key, 7)

    # Inputs.
    x = jax.random.normal(k_x, (B, N, in_dim), jnp.float32)
    local = jax.random.randint(k_idx, (B, N), 0, P3)
    voxel_indices = (jnp.arange(B)[:, None] * P3 + local).reshape(-1).astype(jnp.int32)
    counts = jnp.zeros((B * P3,), jnp.float32).at[voxel_indices].add(1.0)
    num_points = jnp.maximum(counts, 1.0)   # avoid div-by-zero in empty voxels

    # Deterministic parameters (shapes from the module __init__).
    params = {
        "conv_w": 0.1 * jax.random.normal(k_cw, (out_dim, in_dim, 3, 3, 3), jnp.float32),
        "conv_b": 0.1 * jax.random.normal(k_cb, (out_dim,), jnp.float32),
        "gamma_w": 0.1 * jax.random.normal(k_gw, (out_dim, in_dim), jnp.float32),
        "gamma_b": 0.1 * jax.random.normal(k_gb, (out_dim,), jnp.float32),
        "lambda_w": 0.1 * jax.random.normal(k_lw, (out_dim, in_dim), jnp.float32),
    }

    out = vox_mean_forward(
        params, x, voxel_indices, num_points, in_dim=in_dim, out_dim=out_dim
    )
    out = jax.block_until_ready(out)
    assert out.shape == (B, out_dim, N), out.shape
    assert bool(jnp.all(jnp.isfinite(out)))

    ref = vox_mean_reference(
        params, x, voxel_indices, num_points, in_dim=in_dim, out_dim=out_dim
    )
    max_err = float(jnp.max(jnp.abs(out - ref)))
    assert bool(jnp.allclose(out, ref, rtol=2e-2, atol=2e-2)), max_err

    print("KERNEL_OK")
</pallas_src>

<mosaic_0001>
module attributes {stable_mosaic.version = 11 : i64} {
  func.func @_conv_matmul_kernel(%arg0: i32, %arg1: memref<1x128x729xf32, #tpu.memory_space<vmem>>, %arg2: memref<8x128xf32, #tpu.memory_space<vmem>>, %arg3: memref<8x1xf32, #tpu.memory_space<vmem>>, %arg4: memref<1x8x729xf32, #tpu.memory_space<vmem>>) attributes {dimension_semantics = [#tpu.dimension_semantics<parallel>], iteration_bounds = array<i64: 2>, scalar_prefetch = 0 : i64, scratch_operands = 0 : i64, tpu.core_type = #tpu.core_type<tc>, window_params = [{transform_indices = @transform_0, window_bounds = array<i64: 1, 128, 729>}, {pipeline_mode = #tpu.pipeline_mode<synchronous>, transform_indices = @transform_1, window_bounds = array<i64: 8, 128>}, {pipeline_mode = #tpu.pipeline_mode<synchronous>, transform_indices = @transform_2, window_bounds = array<i64: 8, 1>}, {transform_indices = @transform_3, window_bounds = array<i64: 1, 8, 729>}]} {
    %c0 = arith.constant 0 : index
    %c0_0 = arith.constant 0 : index
    %0 = vector.load %arg2[%c0, %c0_0] : memref<8x128xf32, #tpu.memory_space<vmem>>, vector<8x128xf32>
    %c0_1 = arith.constant 0 : index
    %c0_2 = arith.constant 0 : index
    %c0_3 = arith.constant 0 : index
    %1 = vector.load %arg1[%c0_1, %c0_2, %c0_3] : memref<1x128x729xf32, #tpu.memory_space<vmem>>, vector<1x128x729xf32>
    %2 = vector.shape_cast %1 : vector<1x128x729xf32> to vector<128x729xf32>
    %cst = arith.constant dense<0.000000e+00> : vector<8x729xf32>
    %3 = tpu.matmul %0, %2, %cst {dimension_numbers = #tpu.dot_dimension_numbers<[1], [0], [0], [1], [0, 0, 1, 1], [], []>} : vector<8x128xf32>, vector<128x729xf32>, vector<8x729xf32> -> vector<8x729xf32>
    %c0_4 = arith.constant 0 : index
    %c0_5 = arith.constant 0 : index
    %4 = vector.load %arg3[%c0_4, %c0_5] : memref<8x1xf32, #tpu.memory_space<vmem>>, vector<8x1xf32>
    %5 = vector.broadcast %4 : vector<8x1xf32> to vector<8x729xf32>
    %6 = arith.addf %3, %5 : vector<8x729xf32>
    %c0_6 = arith.constant 0 : index
    %c0_7 = arith.constant 0 : index
    %c0_8 = arith.constant 0 : index
    %7 = vector.load %arg4[%c0_6, %c0_7, %c0_8] : memref<1x8x729xf32, #tpu.memory_space<vmem>>, vector<1x8x729xf32>
    %8 = vector.shape_cast %7 : vector<1x8x729xf32> to vector<8x729xf32>
    %9 = vector.shape_cast %6 : vector<8x729xf32> to vector<1x8x729xf32>
    tpu.vector_store %arg4[%c0_6, %c0_7, %c0_8], %9 {strides = array<i32>} : memref<1x8x729xf32, #tpu.memory_space<vmem>>, vector<1x8x729xf32>,
    return
  }
  func.func @transform_0(%arg0: i32) -> (i32, i32, i32) {
    %c0_i32 = arith.constant 0 : i32
    %c0_i32_0 = arith.constant 0 : i32
    %c0_i32_1 = arith.constant 0 : i32
    return %arg0, %c0_i32, %c0_i32_0 : i32, i32, i32
  }
  func.func @transform_1(%arg0: i32) -> (i32, i32) {
    %c0_i32 = arith.constant 0 : i32
    %c0_i32_0 = arith.constant 0 : i32
    %c0_i32_1 = arith.constant 0 : i32
    return %c0_i32, %c0_i32_0 : i32, i32
  }
  func.func @transform_2(%arg0: i32) -> (i32, i32) {
    %c0_i32 = arith.constant 0 : i32
    %c0_i32_0 = arith.constant 0 : i32
    %c0_i32_1 = arith.constant 0 : i32
    return %c0_i32, %c0_i32_0 : i32, i32
  }
  func.func @transform_3(%arg0: i32) -> (i32, i32, i32) {
    %c0_i32 = arith.constant 0 : i32
    %c0_i32_0 = arith.constant 0 : i32
    %c0_i32_1 = arith.constant 0 : i32
    return %arg0, %c0_i32, %c0_i32_0 : i32, i32, i32
  }
}

</mosaic_0001>

<llo_original>
// kernel: tpu_custom_call.1
$region0: #{tpu_custom_call.1}
  #allocation0 [shape = 'u32[]', space=smem, size = 0x4, offset = 0x4, fixed_abs, tag = 'smem constant byte address 0x4 - core index']
  #allocation1 [shape = 'u32[144,128]{1,0:T(1,128)}', space=vmem, size = 0x12000, scoped, tag = 'internal scratch']
  %s0 = inlined_call_operand.vmem [shape: f32[2,128,729], index: 0, kind: input, shape index: {}]
  %s1 = inlined_call_operand.vmem [shape: f32[8,128], index: 1, kind: input, shape index: {}]
  %s2 = inlined_call_operand.vmem [shape: f32[8,1], index: 2, kind: input, shape index: {}]
  %s3 = inlined_call_operand.hbm [shape: f32[2,8,729], index: 3, kind: output, shape index: {}]
  %s4 = sld [smem:[#allocation0]]
  $region45: #{tpu_custom_call.1} parent=0
    _
  %s6 = ssub.s32 1, %s4
  %s7 = scalar_select 0, %s6, %s4
  $region1: #{tpu_custom_call.1} parent=0
    #allocation2 [shape = 'u8[49152]{0}', space=vmem, size = 0xc000, scoped, tag = 'output window, operand 0']
    #allocation3 [shape = 's32[2]{0}', space=sflag, size = 0x8, scoped, tag = 'scoped memory for tpu_custom_call.1']
    %8 = vsyncpa [#allocation3], 0
    %s9 = scalar_lea.sflag [#allocation3], 1
    %10 = vsyncpa %s9, 0
    loop: start=0, step=1, limit=4
    $region2: #{tpu_custom_call.1} parent=1 // loop_pre_header
      _
    $region3: #{tpu_custom_call.1} parent=1 // loop_header
      %s12 = sphi 0, %s16
      %p13 = scmp.ge.s32.totalorder %s12, 4
      %s22 = sphi 0, %s24
      %s25 = sphi 0, %s22
      %s26 = sphi 0, %s25
      %s42 = sphi 0, %s26
      %s46 = sphi 0, %s46
      %s48 = sphi 0, %s46
      %s49 = sphi 0, %s48
      %s63 = sphi 0, %s49
      %s67 = sphi 0, %s67
      %s69 = sphi 0, %s67
      %s70 = sphi 0, %s69
      %s84 = sphi 0, %s70
      %s90 = sphi 0, %s92
      %s93 = sphi 0, %s90
      %s94 = sphi 0, %s93
      %s110 = sphi 0, %s94
    $region4: #{tpu_custom_call.1} parent=1 // loop_header_branch
      %15 = sbr.rel (%p13) target = $region8
    $region5: #{tpu_custom_call.1} parent=1 // loop_body
      %s17 = ssub.s32 %s12, 1
      %s18 = ssub.s32 %s12, 2
      %s19 = sadd.s32 %s12, 1
      %s20 = ssub.s32 %s12, %s19
      %p21 = scmp.eq.s32.totalorder %s20, 0
      %s23 = sadd.s32 %s22, 1
      %s24 = scalar_select %p21, %s22, %s23
      %p27 = pneg %p21
      %p28 = scmp.eq.s32.totalorder %s12, 1
      %p29 = por %p27, %p28
      %p30 = scmp.ne.s32.totalorder %s22, %s25
      %p31 = scmp.eq.s32.totalorder %s12, 0
      %p32 = por %p30, %p31
      %p33 = scmp.ne.s32.totalorder %s22, %s25
      %p34 = scmp.eq.s32.totalorder %s17, 1
      %p35 = por %p33, %p34
      %p36 = scmp.ne.s32.totalorder %s25, %s26
      %p37 = scmp.eq.s32.totalorder %s17, 0
      %p38 = por %p36, %p37
      %p39 = scmp.ne.s32.totalorder %s25, %s26
      %p40 = scmp.eq.s32.totalorder %s18, 1
      %p41 = por %p39, %p40
      %p43 = scmp.ne.s32.totalorder %s26, %s42
      %p44 = scmp.eq.s32.totalorder %s18, 0
      %p45 = por %p43, %p44
      %s47 = sadd.s32 %s46, 1
      %p50 = scmp.eq.s32.totalorder %s12, 1
      %p51 = scmp.ne.s32.totalorder %s46, %s48
      %p52 = scmp.eq.s32.totalorder %s12, 0
      %p53 = por %p51, %p52
      %p54 = scmp.ne.s32.totalorder %s46, %s48
      %p55 = scmp.eq.s32.totalorder %s17, 1
      %p56 = por %p54, %p55
      %p57 = scmp.ne.s32.totalorder %s48, %s49
      %p58 = scmp.eq.s32.totalorder %s17, 0
      %p59 = por %p57, %p58
      %p60 = scmp.ne.s32.totalorder %s48, %s49
      %p61 = scmp.eq.s32.totalorder %s18, 1
      %p62 = por %p60, %p61
      %p64 = scmp.ne.s32.totalorder %s49, %s63
      %p65 = scmp.eq.s32.totalorder %s18, 0
      %p66 = por %p64, %p65
      %s68 = sadd.s32 %s67, 1
      %p71 = scmp.eq.s32.totalorder %s12, 1
      %p72 = scmp.ne.s32.totalorder %s67, %s69
      %p73 = scmp.eq.s32.totalorder %s12, 0
      %p74 = por %p72, %p73
      %p75 = scmp.ne.s32.totalorder %s67, %s69
      %p76 = scmp.eq.s32.totalorder %s17, 1
      %p77 = por %p75, %p76
      %p78 = scmp.ne.s32.totalorder %s69, %s70
      %p79 = scmp.eq.s32.totalorder %s17, 0
      %p80 = por %p78, %p79
      %p81 = scmp.ne.s32.totalorder %s69, %s70
      %p82 = scmp.eq.s32.totalorder %s18, 1
      %p83 = por %p81, %p82
      %p85 = scmp.ne.s32.totalorder %s70, %s84
      %p86 = scmp.eq.s32.totalorder %s18, 0
      %p87 = por %p85, %p86
      %s88 = ssub.s32 %s12, %s19
      %p89 = scmp.eq.s32.totalorder %s88, 0
      %s91 = sadd.s32 %s90, 1
      %s92 = scalar_select %p89, %s90, %s91
      %p95 = pneg %p89
      %p96 = scmp.eq.s32.totalorder %s12, 1
      %p97 = por %p95, %p96
      %p98 = scmp.ne.s32.totalorder %s90, %s93
      %p99 = scmp.eq.s32.totalorder %s12, 0
      %p100 = por %p98, %p99
      %p101 = scmp.ne.s32.totalorder %s90, %s93
      %p102 = scmp.eq.s32.totalorder %s17, 1
      %p103 = por %p101, %p102
      %p104 = scmp.ne.s32.totalorder %s93, %s94
      %p105 = scmp.eq.s32.totalorder %s17, 0
      %p106 = por %p104, %p105
      %p107 = scmp.ne.s32.totalorder %s93, %s94
      %p108 = scmp.eq.s32.totalorder %s18, 1
      %p109 = por %p107, %p108
      %p111 = scmp.ne.s32.totalorder %s94, %s110
      %p112 = scmp.eq.s32.totalorder %s18, 0
      %p113 = por %p111, %p112
      %p114 = scmp.le.s32.totalorder 1, %s12
      %p115 = scmp.lt.s32.totalorder %s12, 3
      %p116 = pnand %p114, %p115
      %p117 = pneg %p116
      // Predicated region
      $region9: #{tpu_custom_call.1} parent=5 // pred_check
        _
      $region10: #{tpu_custom_call.1} parent=5 // pred_check_branch
        %119 = sbr.rel (%p116) target = $region12
      $region11: #{tpu_custom_call.1} parent=5 // pred_region
        %s120 = ssub.s32 %s12, 1
        // Predicated region
        $region13: #{tpu_custom_call.1} parent=11 // pred_check
          %p121 = pneg %p59
        $region14: #{tpu_custom_call.1} parent=11 // pred_check_branch
          %123 = sbr.rel (%p121) target = $region16
        $region15: #{tpu_custom_call.1} parent=11 // pred_region
          _
        $region16: #{tpu_custom_call.1} parent=11 // pred_fallthru
          _
        // Predicated region
        $region17: #{tpu_custom_call.1} parent=11 // pred_check
          %p124 = pneg %p80
        $region18: #{tpu_custom_call.1} parent=11 // pred_check_branch
          %126 = sbr.rel (%p124) target = $region20
        $region19: #{tpu_custom_call.1} parent=11 // pred_region
          _
        $region20: #{tpu_custom_call.1} parent=11 // pred_fallthru
          _
      $region12: #{tpu_custom_call.1} parent=5 // pred_fallthru
        _
      %p127 = scmp.lt.s32.totalorder %s12, 2
      // Predicated region
      $region21: #{tpu_custom_call.1} parent=5 // pred_check
        %p128 = pneg %p127
      $region22: #{tpu_custom_call.1} parent=5 // pred_check_branch
        %130 = sbr.rel (%p128) target = $region24
      $region23: #{tpu_custom_call.1} parent=5 // pred_region
        // Predicated region
        $region25: #{tpu_custom_call.1} parent=23 // pred_check
          %p131 = pneg %p32
        $region26: #{tpu_custom_call.1} parent=23 // pred_check_branch
          %133 = sbr.rel (%p131) target = $region28
        $region27: #{tpu_custom_call.1} parent=23 // pred_region
          %p134 = scmp.lt.s32.totalorder %s12, 1
          %s135 = scalar_select %p134, %s12, 1
          %s136 = smul.addr %s135, 96
          %s137 = smul.addr %s136, 8
          %s138 = scalar_lea.vmem %s0, %s137
        $region28: #{tpu_custom_call.1} parent=23 // pred_fallthru
          _
      $region24: #{tpu_custom_call.1} parent=5 // pred_fallthru
        _
      %p139 = scmp.le.s32.totalorder 1, %s12
      %p140 = scmp.lt.s32.totalorder %s12, 3
      %p141 = pnand %p139, %p140
      %p142 = pneg %p141
      // Predicated region
      $region29: #{tpu_custom_call.1} parent=5 // pred_check
        _
      $region30: #{tpu_custom_call.1} parent=5 // pred_check_branch
        %144 = sbr.rel (%p141) target = $region32
      $region31: #{tpu_custom_call.1} parent=5 // pred_region
        %s145 = ssub.s32 %s12, 1
        %p146 = scmp.lt.s32.totalorder %s17, 1
        %s147 = scalar_select %p146, %s17, 1
        %s148 = smul.addr %s147, 96
        %s149 = smul.addr %s148, 8
        %s150 = scalar_lea.vmem %s0, %s149
        %p151 = pneg %p38
        %p152 = pneg %p35
        %p153 = pneg %p59
        %p154 = pneg %p56
        %p155 = pneg %p80
        %p156 = pneg %p77
        %p157 = pneg %p106
        %p158 = pneg %p103
        %s159 = sand.u32 %s93, 1
        %s160 = scalar_lea.sflag [#allocation3], %s159
        %s161 = sand.u32 %s93, 1
        %s162 = smul.addr %s161, 48
        %s163 = scalar_lea.vmem [#allocation2], %s162
        %p164 = scmp.lt.s32.totalorder %s17, 1
        %s165 = scalar_select %p164, %s17, 1
        %s166 = smul.addr %s165, 96
        %s167 = smul.addr %s166, 8
        %s168 = scalar_lea.vmem %s0, %s167
        %v169 = vld [vmem:[%s1] sm:$0xff]
        %v170 = vld [vmem:[%s168] sm:$0xff]
        %v171 = vld [vmem:[%s168 + $0x8] sm:$0xff]
        %v172 = vld [vmem:[%s168 + $0x10] sm:$0xff]
        %v173 = vld [vmem:[%s168 + $0x18] sm:$0xff]
        %v174 = vld [vmem:[%s168 + $0x20] sm:$0xff]
        %v175 = vld [vmem:[%s168 + $0x28] sm:$0xff]
        %v176 = vld [vmem:[%s168 + $0x30] sm:$0xff]
        %v177 = vld [vmem:[%s168 + $0x38] sm:$0xff]
        %v178 = vld [vmem:[%s168 + $0x40] sm:$0xff]
        %v179 = vld [vmem:[%s168 + $0x48] sm:$0xff]
        %v180 = vld [vmem:[%s168 + $0x50] sm:$0xff]
        %v181 = vld [vmem:[%s168 + $0x58] sm:$0xff]
        %v182 = vld [vmem:[%s168 + $0x60] sm:$0xff]
        %v183 = vld [vmem:[%s168 + $0x68] sm:$0xff]
        %v184 = vld [vmem:[%s168 + $0x70] sm:$0xff]
        %v185 = vld [vmem:[%s168 + $0x78] sm:$0xff]
        %v186 = vld [vmem:[%s168 + $0x80] sm:$0xff]
        %v187 = vld [vmem:[%s168 + $0x88] sm:$0xff]
        %v188 = vld [vmem:[%s168 + $0x90] sm:$0xff]
        %v189 = vld [vmem:[%s168 + $0x98] sm:$0xff]
        %v190 = vld [vmem:[%s168 + $0xa0] sm:$0xff]
        %v191 = vld [vmem:[%s168 + $0xa8] sm:$0xff]
        %v192 = vld [vmem:[%s168 + $0xb0] sm:$0xff]
        %v193 = vld [vmem:[%s168 + $0xb8] sm:$0xff]
        %v194 = vld [vmem:[%s168 + $0xc0] sm:$0xff]
        %v195 = vld [vmem:[%s168 + $0xc8] sm:$0xff]
        %v196 = vld [vmem:[%s168 + $0xd0] sm:$0xff]
        %v197 = vld [vmem:[%s168 + $0xd8] sm:$0xff]
        %v198 = vld [vmem:[%s168 + $0xe0] sm:$0xff]
        %v199 = vld [vmem:[%s168 + $0xe8] sm:$0xff]
        %v200 = vld [vmem:[%s168 + $0xf0] sm:$0xff]
        %v201 = vld [vmem:[%s168 + $0xf8] sm:$0xff]
        %v202 = vld [vmem:[%s168 + $0x100] sm:$0xff]
        %v203 = vld [vmem:[%s168 + $0x108] sm:$0xff]
        %v204 = vld [vmem:[%s168 + $0x110] sm:$0xff]
        %v205 = vld [vmem:[%s168 + $0x118] sm:$0xff]
        %v206 = vld [vmem:[%s168 + $0x120] sm:$0xff]
        %v207 = vld [vmem:[%s168 + $0x128] sm:$0xff]
        %v208 = vld [vmem:[%s168 + $0x130] sm:$0xff]
        %v209 = vld [vmem:[%s168 + $0x138] sm:$0xff]
        %v210 = vld [vmem:[%s168 + $0x140] sm:$0xff]
        %v211 = vld [vmem:[%s168 + $0x148] sm:$0xff]
        %v212 = vld [vmem:[%s168 + $0x150] sm:$0xff]
        %v213 = vld [vmem:[%s168 + $0x158] sm:$0xff]
        %v214 = vld [vmem:[%s168 + $0x160] sm:$0xff]
        %v215 = vld [vmem:[%s168 + $0x168] sm:$0xff]
        %v216 = vld [vmem:[%s168 + $0x170] sm:$0xff]
        %v217 = vld [vmem:[%s168 + $0x178] sm:$0xff]
        %v218 = vld [vmem:[%s168 + $0x180] sm:$0xff]
        %v219 = vld [vmem:[%s168 + $0x188] sm:$0xff]
        %v220 = vld [vmem:[%s168 + $0x190] sm:$0xff]
        %v221 = vld [vmem:[%s168 + $0x198] sm:$0xff]
        %v222 = vld [vmem:[%s168 + $0x1a0] sm:$0xff]
        %v223 = vld [vmem:[%s168 + $0x1a8] sm:$0xff]
        %v224 = vld [vmem:[%s168 + $0x1b0] sm:$0xff]
        %v225 = vld [vmem:[%s168 + $0x1b8] sm:$0xff]
        %v226 = vld [vmem:[%s168 + $0x1c0] sm:$0xff]
        %v227 = vld [vmem:[%s168 + $0x1c8] sm:$0xff]
        %v228 = vld [vmem:[%s168 + $0x1d0] sm:$0xff]
        %v229 = vld [vmem:[%s168 + $0x1d8] sm:$0xff]
        %v230 = vld [vmem:[%s168 + $0x1e0] sm:$0xff]
        %v231 = vld [vmem:[%s168 + $0x1e8] sm:$0xff]
        %v232 = vld [vmem:[%s168 + $0x1f0] sm:$0xff]
        %v233 = vld [vmem:[%s168 + $0x1f8] sm:$0xff]
        %v234 = vld [vmem:[%s168 + $0x200] sm:$0xff]
        %v235 = vld [vmem:[%s168 + $0x208] sm:$0xff]
        %v236 = vld [vmem:[%s168 + $0x210] sm:$0xff]
        %v237 = vld [vmem:[%s168 + $0x218] sm:$0xff]
        %v238 = vld [vmem:[%s168 + $0x220] sm:$0xff]
        %v239 = vld [vmem:[%s168 + $0x228] sm:$0xff]
        %v240 = vld [vmem:[%s168 + $0x230] sm:$0xff]
        %v241 = vld [vmem:[%s168 + $0x238] sm:$0xff]
        %v242 = vld [vmem:[%s168 + $0x240] sm:$0xff]
        %v243 = vld [vmem:[%s168 + $0x248] sm:$0xff]
        %v244 = vld [vmem:[%s168 + $0x250] sm:$0xff]
        %v245 = vld [vmem:[%s168 + $0x258] sm:$0xff]
        %v246 = vld [vmem:[%s168 + $0x260] sm:$0xff]
        %v247 = vld [vmem:[%s168 + $0x268] sm:$0xff]
        %v248 = vld [vmem:[%s168 + $0x270] sm:$0xff]
        %v249 = vld [vmem:[%s168 + $0x278] sm:$0xff]
        %v250 = vld [vmem:[%s168 + $0x280] sm:$0xff]
        %v251 = vld [vmem:[%s168 + $0x288] sm:$0xff]
        %v252 = vld [vmem:[%s168 + $0x290] sm:$0xff]
        %v253 = vld [vmem:[%s168 + $0x298] sm:$0xff]
        %v254 = vld [vmem:[%s168 + $0x2a0] sm:$0xff]
        %v255 = vld [vmem:[%s168 + $0x2a8] sm:$0xff]
        %v256 = vld [vmem:[%s168 + $0x2b0] sm:$0xff]
        %v257 = vld [vmem:[%s168 + $0x2b8] sm:$0xff]
        %v258 = vld [vmem:[%s168 + $0x2c0] sm:$0xff]
        %v259 = vld [vmem:[%s168 + $0x2c8] sm:$0xff]
        %v260 = vld [vmem:[%s168 + $0x2d0] sm:$0xff]
        %v261 = vld [vmem:[%s168 + $0x2d8] sm:$0xff]
        %v262 = vld [vmem:[%s168 + $0x2e0] sm:$0xff]
        %v263 = vld [vmem:[%s168 + $0x2e8] sm:$0xff]
        %v264 = vld [vmem:[%s168 + $0x2f0] sm:$0xff]
        %v265 = vld [vmem:[%s168 + $0x2f8] sm:$0xff]
        %v266 = vld [vmem:[%s2] sm:$0xff]
        %268 = vset.pattern.permute.xlu0 0
        %269 = vperm.xlu0 %268, %v266
        %v270 = vpop.permute.xlu0 %269
        %272 = vmatprep.subr.mxu0 %v171
        %273 = vmatpush1.msra.mxu0 %v170
        %274 = vmatprep.subr.mxu0 %v177
        %275 = vmatpush1.msra.mxu0 %v176
        %276 = vmatprep.subr.mxu0 %v183
        %277 = vmatpush1.msra.mxu0 %v182
        %278 = vmatprep.subr.mxu0 %v189
        %279 = vmatpush1.msra.mxu0 %v188
        %280 = vmatprep.subr.mxu0 %v195
        %281 = vmatpush1.msra.mxu0 %v194
        %282 = vmatprep.subr.mxu0 %v201
        %283 = vmatpush1.msra.mxu0 %v200
        %284 = vmatprep.subr.mxu0 %v207
        %285 = vmatpush1.msra.mxu0 %v206
        %286 = vmatprep.subr.mxu0 %v213
        %287 = vmatpush1.msra.mxu0 %v212
        %288 = vmatprep.subr.mxu0 %v219
        %289 = vmatpush1.msra.mxu0 %v218
        %290 = vmatprep.subr.mxu0 %v225
        %291 = vmatpush1.msra.mxu0 %v224
        %292 = vmatprep.subr.mxu0 %v231
        %293 = vmatpush1.msra.mxu0 %v230
        %294 = vmatprep.subr.mxu0 %v237
        %295 = vmatpush1.msra.mxu0 %v236
        %296 = vmatprep.subr.mxu0 %v243
        %297 = vmatpush1.msra.mxu0 %v242
        %298 = vmatprep.subr.mxu0 %v249
        %299 = vmatpush1.msra.mxu0 %v248
        %300 = vmatprep.subr.mxu0 %v255
        %301 = vmatpush1.msra.mxu0 %v254
        %302 = vmatprep.subr.mxu0 %v261
        %303 = vmatpush1.msra.mxu0 %v260
        %304 = vmatprep.subr.mxu0 0.0
        %305 = vmatpush1.msra.mxu0 0.0
        %306 = vmatprep.subr.mxu0 0.0
        %307 = vmatpush1.msra.mxu0 0.0
        %308 = vmatprep.subr.mxu0 0.0
        %309 = vmatpush1.msra.mxu0 0.0
        %310 = vmatprep.subr.mxu0 0.0
        %311 = vmatpush1.msra.mxu0 0.0
        %312 = vmatprep.subr.mxu0 0.0
        %313 = vmatpush1.msra.mxu0 0.0
        %314 = vmatprep.subr.mxu0 0.0
        %315 = vmatpush1.msra.mxu0 0.0
        %316 = vmatprep.subr.mxu0 0.0
        %317 = vmatpush1.msra.mxu0 0.0
        %318 = vmatprep.subr.mxu0 0.0
        %319 = vmatpush1.msra.mxu0 0.0
        %320 = vmatprep.subr.mxu0 0.0
        %321 = vmatpush1.msra.mxu0 0.0
        %322 = vmatprep.subr.mxu0 0.0
        %323 = vmatpush1.msra.mxu0 0.0
        %324 = vmatprep.subr.mxu0 0.0
        %325 = vmatpush1.msra.mxu0 0.0
        %326 = vmatprep.subr.mxu0 0.0
        %327 = vmatpush1.msra.mxu0 0.0
        %328 = vmatprep.subr.mxu0 0.0
        %329 = vmatpush1.msra.mxu0 0.0
        %330 = vmatprep.subr.mxu0 0.0
        %331 = vmatpush1.msra.mxu0 0.0
        %332 = vmatprep.subr.mxu0 0.0
        %333 = vmatpush1.msra.mxu0 0.0
        %334 = vmatprep.subr.mxu0 0.0
        %335 = vmatpush1.msra.mxu0 0.0
        %336 = vmatprep.mubr.f32.mxu0 0.0
        %337 = vmatmul.mubr.f32.gmra.mrb[0].mxu0 %v169
        %v338 = vpop.f32.mrb[0].mxu0
        %v339 = vadd.f32 %v270, %v338
        %v340 = vpop.f32.mrb[0].mxu0
        %v341 = vadd.f32 %v270, %v340
        %342 = vdwg.mxu0
        %343 = vmatprep.subr.mxu0 %v173
        %344 = vmatpush1.msra.mxu0 %v172
        %345 = vmatprep.subr.mxu0 %v179
        %346 = vmatpush1.msra.mxu0 %v178
        %347 = vmatprep.subr.mxu0 %v185
        %348 = vmatpush1.msra.mxu0 %v184
        %349 = vmatprep.subr.mxu0 %v191
        %350 = vmatpush1.msra.mxu0 %v190
        %351 = vmatprep.subr.mxu0 %v197
        %352 = vmatpush1.msra.mxu0 %v196
        %353 = vmatprep.subr.mxu0 %v203
        %354 = vmatpush1.msra.mxu0 %v202
        %355 = vmatprep.subr.mxu0 %v209
        %356 = vmatpush1.msra.mxu0 %v208
        %357 = vmatprep.subr.mxu0 %v215
        %358 = vmatpush1.msra.mxu0 %v214
        %359 = vmatprep.subr.mxu0 %v221
        %360 = vmatpush1.msra.mxu0 %v220
        %361 = vmatprep.subr.mxu0 %v227
        %362 = vmatpush1.msra.mxu0 %v226
        %363 = vmatprep.subr.mxu0 %v233
        %364 = vmatpush1.msra.mxu0 %v232
        %365 = vmatprep.subr.mxu0 %v239
        %366 = vmatpush1.msra.mxu0 %v238
        %367 = vmatprep.subr.mxu0 %v245
        %368 = vmatpush1.msra.mxu0 %v244
        %369 = vmatprep.subr.mxu0 %v251
        %370 = vmatpush1.msra.mxu0 %v250
        %371 = vmatprep.subr.mxu0 %v257
        %372 = vmatpush1.msra.mxu0 %v256
        %373 = vmatprep.subr.mxu0 %v263
        %374 = vmatpush1.msra.mxu0 %v262
        %375 = vmatprep.subr.mxu0 0.0
        %376 = vmatpush1.msra.mxu0 0.0
        %377 = vmatprep.subr.mxu0 0.0
        %378 = vmatpush1.msra.mxu0 0.0
        %379 = vmatprep.subr.mxu0 0.0
        %380 = vmatpush1.msra.mxu0 0.0
        %381 = vmatprep.subr.mxu0 0.0
        %382 = vmatpush1.msra.mxu0 0.0
        %383 = vmatprep.subr.mxu0 0.0
        %384 = vmatpush1.msra.mxu0 0.0
        %385 = vmatprep.subr.mxu0 0.0
        %386 = vmatpush1.msra.mxu0 0.0
        %387 = vmatprep.subr.mxu0 0.0
        %388 = vmatpush1.msra.mxu0 0.0
        %389 = vmatprep.subr.mxu0 0.0
        %390 = vmatpush1.msra.mxu0 0.0
        %391 = vmatprep.subr.mxu0 0.0
        %392 = vmatpush1.msra.mxu0 0.0
        %393 = vmatprep.subr.mxu0 0.0
        %394 = vmatpush1.msra.mxu0 0.0
        %395 = vmatprep.subr.mxu0 0.0
        %396 = vmatpush1.msra.mxu0 0.0
        %397 = vmatprep.subr.mxu0 0.0
        %398 = vmatpush1.msra.mxu0 0.0
        %399 = vmatprep.subr.mxu0 0.0
        %400 = vmatpush1.msra.mxu0 0.0
        %401 = vmatprep.subr.mxu0 0.0
        %402 = vmatpush1.msra.mxu0 0.0
        %403 = vmatprep.subr.mxu0 0.0
        %404 = vmatpush1.msra.mxu0 0.0
        %405 = vmatprep.subr.mxu0 0.0
        %406 = vmatpush1.msra.mxu0 0.0
        %407 = vmatprep.mubr.f32.mxu0 0.0
        %408 = vmatmul.mubr.f32.gmra.mrb[0].mxu0 %v169
        %v409 = vpop.f32.mrb[0].mxu0
        %v410 = vadd.f32 %v270, %v409
        %v411 = vpop.f32.mrb[0].mxu0
        %v412 = vadd.f32 %v270, %v411
        %413 = vdwg.mxu0
        %414 = vmatprep.subr.mxu0 %v175
        %415 = vmatpush1.msra.mxu0 %v174
        %416 = vmatprep.subr.mxu0 %v181
        %417 = vmatpush1.msra.mxu0 %v180
        %418 = vmatprep.subr.mxu0 %v187
        %419 = vmatpush1.msra.mxu0 %v186
        %420 = vmatprep.subr.mxu0 %v193
        %421 = vmatpush1.msra.mxu0 %v192
        %422 = vmatprep.subr.mxu0 %v199
        %423 = vmatpush1.msra.mxu0 %v198
        %424 = vmatprep.subr.mxu0 %v205
        %425 = vmatpush1.msra.mxu0 %v204
        %426 = vmatprep.subr.mxu0 %v211
        %427 = vmatpush1.msra.mxu0 %v210
        %428 = vmatprep.subr.mxu0 %v217
        %429 = vmatpush1.msra.mxu0 %v216
        %430 = vmatprep.subr.mxu0 %v223
        %431 = vmatpush1.msra.mxu0 %v222
        %432 = vmatprep.subr.mxu0 %v229
        %433 = vmatpush1.msra.mxu0 %v228
        %434 = vmatprep.subr.mxu0 %v235
        %435 = vmatpush1.msra.mxu0 %v234
        %436 = vmatprep.subr.mxu0 %v241
        %437 = vmatpush1.msra.mxu0 %v240
        %438 = vmatprep.subr.mxu0 %v247
        %439 = vmatpush1.msra.mxu0 %v246
        %440 = vmatprep.subr.mxu0 %v253
        %441 = vmatpush1.msra.mxu0 %v252
        %442 = vmatprep.subr.mxu0 %v259
        %443 = vmatpush1.msra.mxu0 %v258
        %444 = vmatprep.subr.mxu0 %v265
        %445 = vmatpush1.msra.mxu0 %v264
        %446 = vmatprep.subr.mxu0 0.0
        %447 = vmatpush1.msra.mxu0 0.0
        %448 = vmatprep.subr.mxu0 0.0
        %449 = vmatpush1.msra.mxu0 0.0
        %450 = vmatprep.subr.mxu0 0.0
        %451 = vmatpush1.msra.mxu0 0.0
        %452 = vmatprep.subr.mxu0 0.0
        %453 = vmatpush1.msra.mxu0 0.0
        %454 = vmatprep.subr.mxu0 0.0
        %455 = vmatpush1.msra.mxu0 0.0
        %456 = vmatprep.subr.mxu0 0.0
        %457 = vmatpush1.msra.mxu0 0.0
        %458 = vmatprep.subr.mxu0 0.0
        %459 = vmatpush1.msra.mxu0 0.0
        %460 = vmatprep.subr.mxu0 0.0
        %461 = vmatpush1.msra.mxu0 0.0
        %462 = vmatprep.subr.mxu0 0.0
        %463 = vmatpush1.msra.mxu0 0.0
        %464 = vmatprep.subr.mxu0 0.0
        %465 = vmatpush1.msra.mxu0 0.0
        %466 = vmatprep.subr.mxu0 0.0
        %467 = vmatpush1.msra.mxu0 0.0
        %468 = vmatprep.subr.mxu0 0.0
        %469 = vmatpush1.msra.mxu0 0.0
        %470 = vmatprep.subr.mxu0 0.0
        %471 = vmatpush1.msra.mxu0 0.0
        %472 = vmatprep.subr.mxu0 0.0
        %473 = vmatpush1.msra.mxu0 0.0
        %474 = vmatprep.subr.mxu0 0.0
        %475 = vmatpush1.msra.mxu0 0.0
        %476 = vmatprep.subr.mxu0 0.0
        %477 = vmatpush1.msra.mxu0 0.0
        %478 = vmatprep.mubr.f32.mxu0 0.0
        %479 = vmatmul.mubr.f32.gmra.mrb[0].mxu0 %v169
        %v480 = vpop.f32.mrb[0].mxu0
        %v481 = vadd.f32 %v270, %v480
        %v482 = vpop.f32.mrb[0].mxu0
        %v483 = vadd.f32 %v270, %v482
        %484 = vdwg.mxu0
        %485 = vst [vmem:[%s163] sm:$0xff] %v339
        %486 = vst [vmem:[%s163 + $0x8] sm:$0xff] %v341
        %487 = vst [vmem:[%s163 + $0x10] sm:$0xff] %v410
        %488 = vst [vmem:[%s163 + $0x18] sm:$0xff] %v412
        %489 = vst [vmem:[%s163 + $0x20] sm:$0xff] %v481
        %vm490 = vcmask 728064
        %491 = vst.msk [vmem:[%s163 + $0x28] sm:$0xff] %vm490, %v483
        %s492 = sand.u32 %s93, 1
        %s493 = scalar_lea.sflag [#allocation3], %s492
        %s494 = sand.u32 %s93, 1
        %s495 = smul.addr %s494, 48
        %s496 = scalar_lea.vmem [#allocation2], %s495
        // Predicated region
        $region33: #{tpu_custom_call.1} parent=31 // pred_check
          %p497 = pneg %p103
        $region34: #{tpu_custom_call.1} parent=31 // pred_check_branch
          %499 = sbr.rel (%p497) target = $region36
        $region35: #{tpu_custom_call.1} parent=31 // pred_region
          %s501 = ssub.s32 768, 768
          %502 = vsyncadd %s493, %s501
          %s503 = smul.addr %s17, 6
          %s504 = smul.addr %s503, 128
          %s505 = scalar_lea.hbm %s3, %s504
          %s507 = sshll.u32 %s496, 4
          %s508 = int_to_ptr.vmem [resolvable:$true] %s507
          %510 = dma.vmem_to_hbm [thread:$0]  %s508, 768, %s505, %s493
        $region36: #{tpu_custom_call.1} parent=31 // pred_fallthru
          _
      $region32: #{tpu_custom_call.1} parent=5 // pred_fallthru
        _
      %p511 = scmp.le.s32.totalorder 2, %s12
      // Predicated region
      $region37: #{tpu_custom_call.1} parent=5 // pred_check
        %p512 = pneg %p511
      $region38: #{tpu_custom_call.1} parent=5 // pred_check_branch
        %514 = sbr.rel (%p512) target = $region40
      $region39: #{tpu_custom_call.1} parent=5 // pred_region
        %s515 = ssub.s32 %s12, 2
        // Predicated region
        $region41: #{tpu_custom_call.1} parent=39 // pred_check
          %p516 = pneg %p109
        $region42: #{tpu_custom_call.1} parent=39 // pred_check_branch
          %518 = sbr.rel (%p516) target = $region44
        $region43: #{tpu_custom_call.1} parent=39 // pred_region
          %s519 = sand.u32 %s94, 1
          %s520 = scalar_lea.sflag [#allocation3], %s519
          %s521 = sand.u32 %s94, 1
          %s522 = smul.addr %s521, 48
          %s523 = scalar_lea.vmem [#allocation2], %s522
          %524 = dma.done %s520, 768
        $region44: #{tpu_custom_call.1} parent=39 // pred_fallthru
          _
      $region40: #{tpu_custom_call.1} parent=5 // pred_fallthru
        _
    $region6: #{tpu_custom_call.1} parent=1 // loop_footer
      %s16 = sadd.s32 1, %s12
    $region7: #{tpu_custom_call.1} parent=1 // loop_footer_branch
      %11 = sbr.rel target = $region3
    $region8: #{tpu_custom_call.1} parent=1 // loop_exit
      _
    %525 = vsyncpa [#allocation3], 1
    %s526 = scalar_lea.sflag [#allocation3], 1
    %527 = vsyncpa %s526, 1

</llo_original>
